<compile_context>
chip_gen: v5e
topology: v5e:2x2
jax: 0.10.0
libtpu: 0.0.40
codegen_flags: <defaults>
</compile_context>

<pallas_src>
import jax
import jax.numpy as jnp
from jax.experimental import pallas as pl
from jax.experimental.pallas import tpu as pltpu


def _round_up(n, m):
    return ((n + m - 1) // m) * m


def _mlp_kernel(x_ref, w1_ref, b1_ref, w2_ref, b2_ref, w3_ref, b3_ref, o_ref):
    # x_ref: [TB, I] f32, streamed per grid step.
    # Weights/biases: f32, VMEM-resident across the whole grid (constant index_maps).
    # All matmuls accumulate in f32 on the MXU.
    x = x_ref[...]
    h1 = jnp.dot(x, w1_ref[...], preferred_element_type=jnp.float32)
    h1 = jnp.maximum(h1 + b1_ref[...], 0.0)                       # [TB, H]   f32
    h2 = jnp.dot(h1, w2_ref[...], preferred_element_type=jnp.float32)
    h2 = jnp.maximum(h2 + b2_ref[...], 0.0)                       # [TB, H/2] f32
    y = jnp.dot(h2, w3_ref[...], preferred_element_type=jnp.float32)
    o_ref[...] = (y + b3_ref[...]).astype(o_ref.dtype)            # [TB, O]  narrow store


def target_model_forward(x, params, input_size, *, tile_batch=8192):
    """Equivalent of TargetModel.forward.

    x: any shape whose elements flatten to input_size per row.
    params: dict with w1,b1,w2,b2,w3,b3 (weights stored as [in, out]).
    tile_batch: batch rows per grid step.  Per-step VMEM use is tiny for these
                feature sizes (~a few MiB at 8K rows), well under the scoped
                default on every generation; raise further on v6e if desired
                (add vmem_limit_bytes to CompilerParams when pushing >32 MiB).
    """
    x2d = x.reshape(-1, input_size)                               # x.view(-1, input_size)
    B = x2d.shape[0]
    out_dtype = x2d.dtype

    w1, b1 = params["w1"], params["b1"]
    w2, b2 = params["w2"], params["b2"]
    w3, b3 = params["w3"], params["b3"]
    hidden1 = w1.shape[1]
    hidden2 = w2.shape[1]
    out_size = w3.shape[1]

    # Batch tile: multiple of 8 sublanes; a single grid step for small batches.
    if B <= tile_batch:
        TB = max(8, _round_up(B, 8))
    else:
        TB = max(8, _round_up(tile_batch, 8))
    B_pad = _round_up(B, TB)
    if B_pad != B:
        x2d = jnp.pad(x2d, ((0, B_pad - B), (0, 0)))

    grid = (B_pad // TB,)
    resident = lambda shape: pl.BlockSpec(shape, lambda i: (0, 0))

    flops = 2 * B_pad * (input_size * hidden1 + hidden1 * hidden2 + hidden2 * out_size)
    bytes_accessed = (
        x2d.size * x2d.dtype.itemsize
        + sum(p.size * p.dtype.itemsize for p in (w1, b1, w2, b2, w3, b3))
        + B_pad * out_size * jnp.dtype(out_dtype).itemsize
    )

    out = pl.pallas_call(
        _mlp_kernel,
        out_shape=jax.ShapeDtypeStruct((B_pad, out_size), out_dtype),
        grid=grid,
        in_specs=[
            pl.BlockSpec((TB, input_size), lambda i: (i, 0)),     # streamed x
            resident(w1.shape), resident(b1.shape),               # VMEM-resident params
            resident(w2.shape), resident(b2.shape),
            resident(w3.shape), resident(b3.shape),
        ],
        out_specs=pl.BlockSpec((TB, out_size), lambda i: (i, 0)),
        compiler_params=pltpu.CompilerParams(
            dimension_semantics=("parallel",)),                   # megacore on v7x
        cost_estimate=pl.CostEstimate(
            flops=flops, transcendentals=0, bytes_accessed=bytes_accessed),
    )(x2d, w1, b1, w2, b2, w3, b3)

    if B_pad != B:
        out = out[:B]
    return out


def init_params(key, input_size, hidden_layer_size, output_size, dtype=jnp.float32):
    """Deterministic init mirroring nn.Linear shapes (weights stored [in, out])."""
    sizes = [
        (input_size, hidden_layer_size),
        (hidden_layer_size, hidden_layer_size // 2),
        (hidden_layer_size // 2, output_size),
    ]
    params = {}
    keys = jax.random.split(key, 2 * len(sizes))
    for i, (fan_in, fan_out) in enumerate(sizes):
        bound = 1.0 / jnp.sqrt(fan_in)  # PyTorch default uniform(-1/sqrt(in), 1/sqrt(in))
        params[f"w{i+1}"] = jax.random.uniform(
            keys[2 * i], (fan_in, fan_out), dtype, minval=-bound, maxval=bound)
        params[f"b{i+1}"] = jax.random.uniform(
            keys[2 * i + 1], (1, fan_out), dtype, minval=-bound, maxval=bound)
    return params


if __name__ == "__main__":
    input_size = 32
    hidden_layer_size = 64
    output_size = 8
    batch = 512          # small, but tile_batch=256 exercises a 2-step batch grid

    key = jax.random.PRNGKey(0)
    kx, kp = jax.random.split(key)
    x = jax.random.normal(kx, (batch, input_size), jnp.float32)
    params = init_params(kp, input_size, hidden_layer_size, output_size)

    out = target_model_forward(x, params, input_size, tile_batch=256)
    jax.block_until_ready(out)

    # Pure-JAX f32 reference (matches the kernel's all-f32 math).
    def ref(x2d):
        h1 = jnp.maximum(
            jnp.dot(x2d, params["w1"], preferred_element_type=jnp.float32)
            + params["b1"], 0.0)
        h2 = jnp.maximum(
            jnp.dot(h1, params["w2"], preferred_element_type=jnp.float32)
            + params["b2"], 0.0)
        return (jnp.dot(h2, params["w3"], preferred_element_type=jnp.float32)
                + params["b3"])

    expected = ref(x.reshape(-1, input_size)).astype(out.dtype)
    assert out.shape == (batch, output_size)
    max_err = float(jnp.max(jnp.abs(out - expected)))
    assert jnp.allclose(out, expected, atol=2e-2, rtol=2e-2), max_err

    print("KERNEL_OK")
</pallas_src>

<mosaic_0001>
module attributes {stable_mosaic.version = 11 : i64} {
  func.func @_mlp_kernel(%arg0: i32, %arg1: memref<256x32xf32, #tpu.memory_space<vmem>>, %arg2: memref<32x64xf32, #tpu.memory_space<vmem>>, %arg3: memref<1x64xf32, #tpu.memory_space<vmem>>, %arg4: memref<64x32xf32, #tpu.memory_space<vmem>>, %arg5: memref<1x32xf32, #tpu.memory_space<vmem>>, %arg6: memref<32x8xf32, #tpu.memory_space<vmem>>, %arg7: memref<1x8xf32, #tpu.memory_space<vmem>>, %arg8: memref<256x8xf32, #tpu.memory_space<vmem>>) attributes {dimension_semantics = [#tpu.dimension_semantics<parallel>], iteration_bounds = array<i64: 2>, scalar_prefetch = 0 : i64, scratch_operands = 0 : i64, tpu.core_type = #tpu.core_type<tc>, window_params = [{transform_indices = @transform_0, window_bounds = array<i64: 256, 32>}, {pipeline_mode = #tpu.pipeline_mode<synchronous>, transform_indices = @transform_1, window_bounds = array<i64: 32, 64>}, {pipeline_mode = #tpu.pipeline_mode<synchronous>, transform_indices = @transform_2, window_bounds = array<i64: 1, 64>}, {pipeline_mode = #tpu.pipeline_mode<synchronous>, transform_indices = @transform_3, window_bounds = array<i64: 64, 32>}, {pipeline_mode = #tpu.pipeline_mode<synchronous>, transform_indices = @transform_4, window_bounds = array<i64: 1, 32>}, {pipeline_mode = #tpu.pipeline_mode<synchronous>, transform_indices = @transform_5, window_bounds = array<i64: 32, 8>}, {pipeline_mode = #tpu.pipeline_mode<synchronous>, transform_indices = @transform_6, window_bounds = array<i64: 1, 8>}, {transform_indices = @transform_7, window_bounds = array<i64: 256, 8>}]} {
    %c0 = arith.constant 0 : index
    %c0_0 = arith.constant 0 : index
    %0 = vector.load %arg1[%c0, %c0_0] : memref<256x32xf32, #tpu.memory_space<vmem>>, vector<256x32xf32>
    %c0_1 = arith.constant 0 : index
    %c0_2 = arith.constant 0 : index
    %1 = vector.load %arg2[%c0_1, %c0_2] : memref<32x64xf32, #tpu.memory_space<vmem>>, vector<32x64xf32>
    %cst = arith.constant dense<0.000000e+00> : vector<256x64xf32>
    %2 = tpu.matmul %0, %1, %cst {dimension_numbers = #tpu.dot_dimension_numbers<[1], [0], [0], [1], [0, 0, 1, 1], [], []>} : vector<256x32xf32>, vector<32x64xf32>, vector<256x64xf32> -> vector<256x64xf32>
    %c0_3 = arith.constant 0 : index
    %c0_4 = arith.constant 0 : index
    %3 = vector.load %arg3[%c0_3, %c0_4] : memref<1x64xf32, #tpu.memory_space<vmem>>, vector<1x64xf32>
    %4 = vector.broadcast %3 : vector<1x64xf32> to vector<256x64xf32>
    %5 = arith.addf %2, %4 : vector<256x64xf32>
    %cst_5 = arith.constant 0.000000e+00 : f32
    %6 = vector.broadcast %cst_5 : f32 to vector<256x64xf32>
    %7 = arith.maximumf %5, %6 : vector<256x64xf32>
    %c0_6 = arith.constant 0 : index
    %c0_7 = arith.constant 0 : index
    %8 = vector.load %arg4[%c0_6, %c0_7] : memref<64x32xf32, #tpu.memory_space<vmem>>, vector<64x32xf32>
    %cst_8 = arith.constant dense<0.000000e+00> : vector<256x32xf32>
    %9 = tpu.matmul %7, %8, %cst_8 {dimension_numbers = #tpu.dot_dimension_numbers<[1], [0], [0], [1], [0, 0, 1, 1], [], []>} : vector<256x64xf32>, vector<64x32xf32>, vector<256x32xf32> -> vector<256x32xf32>
    %c0_9 = arith.constant 0 : index
    %c0_10 = arith.constant 0 : index
    %10 = vector.load %arg5[%c0_9, %c0_10] : memref<1x32xf32, #tpu.memory_space<vmem>>, vector<1x32xf32>
    %11 = vector.broadcast %10 : vector<1x32xf32> to vector<256x32xf32>
    %12 = arith.addf %9, %11 : vector<256x32xf32>
    %cst_11 = arith.constant 0.000000e+00 : f32
    %13 = vector.broadcast %cst_11 : f32 to vector<256x32xf32>
    %14 = arith.maximumf %12, %13 : vector<256x32xf32>
    %c0_12 = arith.constant 0 : index
    %c0_13 = arith.constant 0 : index
    %15 = vector.load %arg6[%c0_12, %c0_13] : memref<32x8xf32, #tpu.memory_space<vmem>>, vector<32x8xf32>
    %cst_14 = arith.constant dense<0.000000e+00> : vector<256x8xf32>
    %16 = tpu.matmul %14, %15, %cst_14 {dimension_numbers = #tpu.dot_dimension_numbers<[1], [0], [0], [1], [0, 0, 1, 1], [], []>} : vector<256x32xf32>, vector<32x8xf32>, vector<256x8xf32> -> vector<256x8xf32>
    %c0_15 = arith.constant 0 : index
    %c0_16 = arith.constant 0 : index
    %17 = vector.load %arg7[%c0_15, %c0_16] : memref<1x8xf32, #tpu.memory_space<vmem>>, vector<1x8xf32>
    %18 = vector.broadcast %17 : vector<1x8xf32> to vector<256x8xf32>
    %19 = arith.addf %16, %18 : vector<256x8xf32>
    %c0_17 = arith.constant 0 : index
    %c0_18 = arith.constant 0 : index
    %20 = vector.load %arg8[%c0_17, %c0_18] : memref<256x8xf32, #tpu.memory_space<vmem>>, vector<256x8xf32>
    tpu.vector_store %arg8[%c0_17, %c0_18], %19 {strides = array<i32>} : memref<256x8xf32, #tpu.memory_space<vmem>>, vector<256x8xf32>,
    return
  }
  func.func @transform_0(%arg0: i32) -> (i32, i32) {
    %c0_i32 = arith.constant 0 : i32
    %c0_i32_0 = arith.constant 0 : i32
    return %arg0, %c0_i32 : i32, i32
  }
  func.func @transform_1(%arg0: i32) -> (i32, i32) {
    %c0_i32 = arith.constant 0 : i32
    %c0_i32_0 = arith.constant 0 : i32
    %c0_i32_1 = arith.constant 0 : i32
    return %c0_i32, %c0_i32_0 : i32, i32
  }
  func.func @transform_2(%arg0: i32) -> (i32, i32) {
    %c0_i32 = arith.constant 0 : i32
    %c0_i32_0 = arith.constant 0 : i32
    %c0_i32_1 = arith.constant 0 : i32
    return %c0_i32, %c0_i32_0 : i32, i32
  }
  func.func @transform_3(%arg0: i32) -> (i32, i32) {
    %c0_i32 = arith.constant 0 : i32
    %c0_i32_0 = arith.constant 0 : i32
    %c0_i32_1 = arith.constant 0 : i32
    return %c0_i32, %c0_i32_0 : i32, i32
  }
  func.func @transform_4(%arg0: i32) -> (i32, i32) {
    %c0_i32 = arith.constant 0 : i32
    %c0_i32_0 = arith.constant 0 : i32
    %c0_i32_1 = arith.constant 0 : i32
    return %c0_i32, %c0_i32_0 : i32, i32
  }
  func.func @transform_5(%arg0: i32) -> (i32, i32) {
    %c0_i32 = arith.constant 0 : i32
    %c0_i32_0 = arith.constant 0 : i32
    %c0_i32_1 = arith.constant 0 : i32
    return %c0_i32, %c0_i32_0 : i32, i32
  }
  func.func @transform_6(%arg0: i32) -> (i32, i32) {
    %c0_i32 = arith.constant 0 : i32
    %c0_i32_0 = arith.constant 0 : i32
    %c0_i32_1 = arith.constant 0 : i32
    return %c0_i32, %c0_i32_0 : i32, i32
  }
  func.func @transform_7(%arg0: i32) -> (i32, i32) {
    %c0_i32 = arith.constant 0 : i32
    %c0_i32_0 = arith.constant 0 : i32
    return %arg0, %c0_i32 : i32, i32
  }
}

</mosaic_0001>

<llo_original>
// kernel: tpu_custom_call.1
$region0: #{tpu_custom_call.1}
  #allocation0 [shape = 'u32[]', space=smem, size = 0x4, offset = 0x4, fixed_abs, tag = 'smem constant byte address 0x4 - core index']
  #allocation1 [shape = 'u32[72,128]{1,0:T(1,128)}', space=vmem, size = 0x9000, scoped, tag = 'internal scratch']
  %s0 = inlined_call_operand.vmem [shape: f32[512,32], index: 0, kind: input, shape index: {}]
  %s1 = inlined_call_operand.vmem [shape: f32[32,64], index: 1, kind: input, shape index: {}]
  %s2 = inlined_call_operand.vmem [shape: f32[1,64], index: 2, kind: input, shape index: {}]
  %s3 = inlined_call_operand.vmem [shape: f32[64,32], index: 3, kind: input, shape index: {}]
  %s4 = inlined_call_operand.vmem [shape: f32[1,32], index: 4, kind: input, shape index: {}]
  %s5 = inlined_call_operand.vmem [shape: f32[32,8], index: 5, kind: input, shape index: {}]
  %s6 = inlined_call_operand.vmem [shape: f32[1,8], index: 6, kind: input, shape index: {}]
  %s7 = inlined_call_operand.vmem [shape: f32[512,8], index: 7, kind: output, shape index: {}]
  %s8 = sld [smem:[#allocation0]]
  $region61: #{tpu_custom_call.1} parent=0
    _
  %s10 = ssub.s32 1, %s8
  %s11 = scalar_select 0, %s10, %s8
  loop: start=0, step=1, limit=4
  $region2: #{tpu_custom_call.1} parent=0 // loop_pre_header
    _
  $region3: #{tpu_custom_call.1} parent=0 // loop_header
    %s13 = sphi 0, %s17
    %p14 = scmp.ge.s32.totalorder %s13, 4
    %s23 = sphi 0, %s25
    %s26 = sphi 0, %s23
    %s27 = sphi 0, %s26
    %s43 = sphi 0, %s27
    %s47 = sphi 0, %s47
    %s49 = sphi 0, %s47
    %s50 = sphi 0, %s49
    %s64 = sphi 0, %s50
    %s68 = sphi 0, %s68
    %s70 = sphi 0, %s68
    %s71 = sphi 0, %s70
    %s85 = sphi 0, %s71
    %s89 = sphi 0, %s89
    %s91 = sphi 0, %s89
    %s92 = sphi 0, %s91
    %s106 = sphi 0, %s92
    %s110 = sphi 0, %s110
    %s112 = sphi 0, %s110
    %s113 = sphi 0, %s112
    %s127 = sphi 0, %s113
    %s131 = sphi 0, %s131
    %s133 = sphi 0, %s131
    %s134 = sphi 0, %s133
    %s148 = sphi 0, %s134
    %s152 = sphi 0, %s152
    %s154 = sphi 0, %s152
    %s155 = sphi 0, %s154
    %s169 = sphi 0, %s155
    %s175 = sphi 0, %s177
    %s178 = sphi 0, %s175
    %s179 = sphi 0, %s178
    %s195 = sphi 0, %s179
  $region4: #{tpu_custom_call.1} parent=0 // loop_header_branch
    %16 = sbr.rel (%p14) target = $region8
  $region5: #{tpu_custom_call.1} parent=0 // loop_body
    %s18 = ssub.s32 %s13, 1
    %s19 = ssub.s32 %s13, 2
    %s20 = sadd.s32 %s13, 1
    %s21 = ssub.s32 %s13, %s20
    %p22 = scmp.eq.s32.totalorder %s21, 0
    %s24 = sadd.s32 %s23, 1
    %s25 = scalar_select %p22, %s23, %s24
    %p28 = pneg %p22
    %p29 = scmp.eq.s32.totalorder %s13, 1
    %p30 = por %p28, %p29
    %p31 = scmp.ne.s32.totalorder %s23, %s26
    %p32 = scmp.eq.s32.totalorder %s13, 0
    %p33 = por %p31, %p32
    %p34 = scmp.ne.s32.totalorder %s23, %s26
    %p35 = scmp.eq.s32.totalorder %s18, 1
    %p36 = por %p34, %p35
    %p37 = scmp.ne.s32.totalorder %s26, %s27
    %p38 = scmp.eq.s32.totalorder %s18, 0
    %p39 = por %p37, %p38
    %p40 = scmp.ne.s32.totalorder %s26, %s27
    %p41 = scmp.eq.s32.totalorder %s19, 1
    %p42 = por %p40, %p41
    %p44 = scmp.ne.s32.totalorder %s27, %s43
    %p45 = scmp.eq.s32.totalorder %s19, 0
    %p46 = por %p44, %p45
    %s48 = sadd.s32 %s47, 1
    %p51 = scmp.eq.s32.totalorder %s13, 1
    %p52 = scmp.ne.s32.totalorder %s47, %s49
    %p53 = scmp.eq.s32.totalorder %s13, 0
    %p54 = por %p52, %p53
    %p55 = scmp.ne.s32.totalorder %s47, %s49
    %p56 = scmp.eq.s32.totalorder %s18, 1
    %p57 = por %p55, %p56
    %p58 = scmp.ne.s32.totalorder %s49, %s50
    %p59 = scmp.eq.s32.totalorder %s18, 0
    %p60 = por %p58, %p59
    %p61 = scmp.ne.s32.totalorder %s49, %s50
    %p62 = scmp.eq.s32.totalorder %s19, 1
    %p63 = por %p61, %p62
    %p65 = scmp.ne.s32.totalorder %s50, %s64
    %p66 = scmp.eq.s32.totalorder %s19, 0
    %p67 = por %p65, %p66
    %s69 = sadd.s32 %s68, 1
    %p72 = scmp.eq.s32.totalorder %s13, 1
    %p73 = scmp.ne.s32.totalorder %s68, %s70
    %p74 = scmp.eq.s32.totalorder %s13, 0
    %p75 = por %p73, %p74
    %p76 = scmp.ne.s32.totalorder %s68, %s70
    %p77 = scmp.eq.s32.totalorder %s18, 1
    %p78 = por %p76, %p77
    %p79 = scmp.ne.s32.totalorder %s70, %s71
    %p80 = scmp.eq.s32.totalorder %s18, 0
    %p81 = por %p79, %p80
    %p82 = scmp.ne.s32.totalorder %s70, %s71
    %p83 = scmp.eq.s32.totalorder %s19, 1
    %p84 = por %p82, %p83
    %p86 = scmp.ne.s32.totalorder %s71, %s85
    %p87 = scmp.eq.s32.totalorder %s19, 0
    %p88 = por %p86, %p87
    %s90 = sadd.s32 %s89, 1
    %p93 = scmp.eq.s32.totalorder %s13, 1
    %p94 = scmp.ne.s32.totalorder %s89, %s91
    %p95 = scmp.eq.s32.totalorder %s13, 0
    %p96 = por %p94, %p95
    %p97 = scmp.ne.s32.totalorder %s89, %s91
    %p98 = scmp.eq.s32.totalorder %s18, 1
    %p99 = por %p97, %p98
    %p100 = scmp.ne.s32.totalorder %s91, %s92
    %p101 = scmp.eq.s32.totalorder %s18, 0
    %p102 = por %p100, %p101
    %p103 = scmp.ne.s32.totalorder %s91, %s92
    %p104 = scmp.eq.s32.totalorder %s19, 1
    %p105 = por %p103, %p104
    %p107 = scmp.ne.s32.totalorder %s92, %s106
    %p108 = scmp.eq.s32.totalorder %s19, 0
    %p109 = por %p107, %p108
    %s111 = sadd.s32 %s110, 1
    %p114 = scmp.eq.s32.totalorder %s13, 1
    %p115 = scmp.ne.s32.totalorder %s110, %s112
    %p116 = scmp.eq.s32.totalorder %s13, 0
    %p117 = por %p115, %p116
    %p118 = scmp.ne.s32.totalorder %s110, %s112
    %p119 = scmp.eq.s32.totalorder %s18, 1
    %p120 = por %p118, %p119
    %p121 = scmp.ne.s32.totalorder %s112, %s113
    %p122 = scmp.eq.s32.totalorder %s18, 0
    %p123 = por %p121, %p122
    %p124 = scmp.ne.s32.totalorder %s112, %s113
    %p125 = scmp.eq.s32.totalorder %s19, 1
    %p126 = por %p124, %p125
    %p128 = scmp.ne.s32.totalorder %s113, %s127
    %p129 = scmp.eq.s32.totalorder %s19, 0
    %p130 = por %p128, %p129
    %s132 = sadd.s32 %s131, 1
    %p135 = scmp.eq.s32.totalorder %s13, 1
    %p136 = scmp.ne.s32.totalorder %s131, %s133
    %p137 = scmp.eq.s32.totalorder %s13, 0
    %p138 = por %p136, %p137
    %p139 = scmp.ne.s32.totalorder %s131, %s133
    %p140 = scmp.eq.s32.totalorder %s18, 1
    %p141 = por %p139, %p140
    %p142 = scmp.ne.s32.totalorder %s133, %s134
    %p143 = scmp.eq.s32.totalorder %s18, 0
    %p144 = por %p142, %p143
    %p145 = scmp.ne.s32.totalorder %s133, %s134
    %p146 = scmp.eq.s32.totalorder %s19, 1
    %p147 = por %p145, %p146
    %p149 = scmp.ne.s32.totalorder %s134, %s148
    %p150 = scmp.eq.s32.totalorder %s19, 0
    %p151 = por %p149, %p150
    %s153 = sadd.s32 %s152, 1
    %p156 = scmp.eq.s32.totalorder %s13, 1
    %p157 = scmp.ne.s32.totalorder %s152, %s154
    %p158 = scmp.eq.s32.totalorder %s13, 0
    %p159 = por %p157, %p158
    %p160 = scmp.ne.s32.totalorder %s152, %s154
    %p161 = scmp.eq.s32.totalorder %s18, 1
    %p162 = por %p160, %p161
    %p163 = scmp.ne.s32.totalorder %s154, %s155
    %p164 = scmp.eq.s32.totalorder %s18, 0
    %p165 = por %p163, %p164
    %p166 = scmp.ne.s32.totalorder %s154, %s155
    %p167 = scmp.eq.s32.totalorder %s19, 1
    %p168 = por %p166, %p167
    %p170 = scmp.ne.s32.totalorder %s155, %s169
    %p171 = scmp.eq.s32.totalorder %s19, 0
    %p172 = por %p170, %p171
    %s173 = ssub.s32 %s13, %s20
    %p174 = scmp.eq.s32.totalorder %s173, 0
    %s176 = sadd.s32 %s175, 1
    %s177 = scalar_select %p174, %s175, %s176
    %p180 = pneg %p174
    %p181 = scmp.eq.s32.totalorder %s13, 1
    %p182 = por %p180, %p181
    %p183 = scmp.ne.s32.totalorder %s175, %s178
    %p184 = scmp.eq.s32.totalorder %s13, 0
    %p185 = por %p183, %p184
    %p186 = scmp.ne.s32.totalorder %s175, %s178
    %p187 = scmp.eq.s32.totalorder %s18, 1
    %p188 = por %p186, %p187
    %p189 = scmp.ne.s32.totalorder %s178, %s179
    %p190 = scmp.eq.s32.totalorder %s18, 0
    %p191 = por %p189, %p190
    %p192 = scmp.ne.s32.totalorder %s178, %s179
    %p193 = scmp.eq.s32.totalorder %s19, 1
    %p194 = por %p192, %p193
    %p196 = scmp.ne.s32.totalorder %s179, %s195
    %p197 = scmp.eq.s32.totalorder %s19, 0
    %p198 = por %p196, %p197
    %p199 = scmp.le.s32.totalorder 1, %s13
    %p200 = scmp.lt.s32.totalorder %s13, 3
    %p201 = pnand %p199, %p200
    %p202 = pneg %p201
    // Predicated region
    $region9: #{tpu_custom_call.1} parent=5 // pred_check
      _
    $region10: #{tpu_custom_call.1} parent=5 // pred_check_branch
      %204 = sbr.rel (%p201) target = $region12
    $region11: #{tpu_custom_call.1} parent=5 // pred_region
      %s205 = ssub.s32 %s13, 1
      // Predicated region
      $region13: #{tpu_custom_call.1} parent=11 // pred_check
        %p206 = pneg %p60
      $region14: #{tpu_custom_call.1} parent=11 // pred_check_branch
        %208 = sbr.rel (%p206) target = $region16
      $region15: #{tpu_custom_call.1} parent=11 // pred_region
        _
      $region16: #{tpu_custom_call.1} parent=11 // pred_fallthru
        _
      // Predicated region
      $region17: #{tpu_custom_call.1} parent=11 // pred_check
        %p209 = pneg %p81
      $region18: #{tpu_custom_call.1} parent=11 // pred_check_branch
        %211 = sbr.rel (%p209) target = $region20
      $region19: #{tpu_custom_call.1} parent=11 // pred_region
        _
      $region20: #{tpu_custom_call.1} parent=11 // pred_fallthru
        _
      // Predicated region
      $region21: #{tpu_custom_call.1} parent=11 // pred_check
        %p212 = pneg %p102
      $region22: #{tpu_custom_call.1} parent=11 // pred_check_branch
        %214 = sbr.rel (%p212) target = $region24
      $region23: #{tpu_custom_call.1} parent=11 // pred_region
        _
      $region24: #{tpu_custom_call.1} parent=11 // pred_fallthru
        _
      // Predicated region
      $region25: #{tpu_custom_call.1} parent=11 // pred_check
        %p215 = pneg %p123
      $region26: #{tpu_custom_call.1} parent=11 // pred_check_branch
        %217 = sbr.rel (%p215) target = $region28
      $region27: #{tpu_custom_call.1} parent=11 // pred_region
        _
      $region28: #{tpu_custom_call.1} parent=11 // pred_fallthru
        _
      // Predicated region
      $region29: #{tpu_custom_call.1} parent=11 // pred_check
        %p218 = pneg %p144
      $region30: #{tpu_custom_call.1} parent=11 // pred_check_branch
        %220 = sbr.rel (%p218) target = $region32
      $region31: #{tpu_custom_call.1} parent=11 // pred_region
        _
      $region32: #{tpu_custom_call.1} parent=11 // pred_fallthru
        _
      // Predicated region
      $region33: #{tpu_custom_call.1} parent=11 // pred_check
        %p221 = pneg %p165
      $region34: #{tpu_custom_call.1} parent=11 // pred_check_branch
        %223 = sbr.rel (%p221) target = $region36
      $region35: #{tpu_custom_call.1} parent=11 // pred_region
        _
      $region36: #{tpu_custom_call.1} parent=11 // pred_fallthru
        _
    $region12: #{tpu_custom_call.1} parent=5 // pred_fallthru
      _
    %p224 = scmp.lt.s32.totalorder %s13, 2
    // Predicated region
    $region37: #{tpu_custom_call.1} parent=5 // pred_check
      %p225 = pneg %p224
    $region38: #{tpu_custom_call.1} parent=5 // pred_check_branch
      %227 = sbr.rel (%p225) target = $region40
    $region39: #{tpu_custom_call.1} parent=5 // pred_region
      // Predicated region
      $region41: #{tpu_custom_call.1} parent=39 // pred_check
        %p228 = pneg %p33
      $region42: #{tpu_custom_call.1} parent=39 // pred_check_branch
        %230 = sbr.rel (%p228) target = $region44
      $region43: #{tpu_custom_call.1} parent=39 // pred_region
        %s231 = smul.u32 32, %s13
        %p232 = scmp.lt.s32.totalorder %s231, 63
        %s233 = scalar_select %p232, %s231, 63
        %s234 = smul.addr %s233, 8
        %s235 = scalar_lea.vmem %s0, %s234
        %s236 = smul.u32 32, %s13
      $region44: #{tpu_custom_call.1} parent=39 // pred_fallthru
        _
    $region40: #{tpu_custom_call.1} parent=5 // pred_fallthru
      _
    %p237 = scmp.le.s32.totalorder 1, %s13
    %p238 = scmp.lt.s32.totalorder %s13, 3
    %p239 = pnand %p237, %p238
    %p240 = pneg %p239
    // Predicated region
    $region45: #{tpu_custom_call.1} parent=5 // pred_check
      _
    $region46: #{tpu_custom_call.1} parent=5 // pred_check_branch
      %242 = sbr.rel (%p239) target = $region48
    $region47: #{tpu_custom_call.1} parent=5 // pred_region
      %s243 = ssub.s32 %s13, 1
      %s244 = smul.u32 32, %s18
      %p245 = scmp.lt.s32.totalorder %s244, 63
      %s246 = scalar_select %p245, %s244, 63
      %s247 = smul.addr %s246, 8
      %s248 = scalar_lea.vmem %s0, %s247
      %p249 = pneg %p39
      %p250 = pneg %p36
      %p251 = pneg %p60
      %p252 = pneg %p57
      %p253 = pneg %p81
      %p254 = pneg %p78
      %p255 = pneg %p102
      %p256 = pneg %p99
      %p257 = pneg %p123
      %p258 = pneg %p120
      %p259 = pneg %p144
      %p260 = pneg %p141
      %p261 = pneg %p165
      %p262 = pneg %p162
      %p263 = pneg %p191
      %p264 = pneg %p188
      %s265 = smul.u32 32, %s18
      %p266 = scmp.lt.s32.totalorder %s265, 63
      %s267 = scalar_select %p266, %s265, 63
      %s268 = smul.addr %s267, 8
      %s269 = scalar_lea.vmem %s7, %s268
      %s270 = smul.u32 32, %s18
      %p271 = scmp.lt.s32.totalorder %s270, 63
      %s272 = scalar_select %p271, %s270, 63
      %s273 = smul.addr %s272, 8
      %s274 = scalar_lea.vmem %s0, %s273
      %s275 = smul.u32 32, %s18
      %s276 = smul.u32 32, %s18
      %p277 = scmp.lt.s32.totalorder %s276, 63
      %s278 = scalar_select %p277, %s276, 63
      %s279 = smul.addr %s278, 8
      %s280 = scalar_lea.vmem %s7, %s279
      %s281 = smul.u32 32, %s18
      %v282 = vld [vmem:[%s274] sm:$0xff]
      %v283 = vld [vmem:[%s274 + $0x8] sm:$0xff]
      %v284 = vld [vmem:[%s274 + $0x10] sm:$0xff]
      %v285 = vld [vmem:[%s274 + $0x18] sm:$0xff]
      %v286 = vld [vmem:[%s274 + $0x20] sm:$0xff]
      %v287 = vld [vmem:[%s274 + $0x28] sm:$0xff]
      %v288 = vld [vmem:[%s274 + $0x30] sm:$0xff]
      %v289 = vld [vmem:[%s274 + $0x38] sm:$0xff]
      %v290 = vld [vmem:[%s274 + $0x40] sm:$0xff]
      %v291 = vld [vmem:[%s274 + $0x48] sm:$0xff]
      %v292 = vld [vmem:[%s274 + $0x50] sm:$0xff]
      %v293 = vld [vmem:[%s274 + $0x58] sm:$0xff]
      %v294 = vld [vmem:[%s274 + $0x60] sm:$0xff]
      %v295 = vld [vmem:[%s274 + $0x68] sm:$0xff]
      %v296 = vld [vmem:[%s274 + $0x70] sm:$0xff]
      %v297 = vld [vmem:[%s274 + $0x78] sm:$0xff]
      %v298 = vld [vmem:[%s274 + $0x80] sm:$0xff]
      %v299 = vld [vmem:[%s274 + $0x88] sm:$0xff]
      %v300 = vld [vmem:[%s274 + $0x90] sm:$0xff]
      %v301 = vld [vmem:[%s274 + $0x98] sm:$0xff]
      %v302 = vld [vmem:[%s274 + $0xa0] sm:$0xff]
      %v303 = vld [vmem:[%s274 + $0xa8] sm:$0xff]
      %v304 = vld [vmem:[%s274 + $0xb0] sm:$0xff]
      %v305 = vld [vmem:[%s274 + $0xb8] sm:$0xff]
      %v306 = vld [vmem:[%s274 + $0xc0] sm:$0xff]
      %v307 = vld [vmem:[%s274 + $0xc8] sm:$0xff]
      %v308 = vld [vmem:[%s274 + $0xd0] sm:$0xff]
      %v309 = vld [vmem:[%s274 + $0xd8] sm:$0xff]
      %v310 = vld [vmem:[%s274 + $0xe0] sm:$0xff]
      %v311 = vld [vmem:[%s274 + $0xe8] sm:$0xff]
      %v312 = vld [vmem:[%s274 + $0xf0] sm:$0xff]
      %v313 = vld [vmem:[%s274 + $0xf8] sm:$0xff]
      %v314 = vld [vmem:[%s1] sm:$0xff]
      %v315 = vld [vmem:[%s1 + $0x8] sm:$0xff]
      %v316 = vld [vmem:[%s1 + $0x10] sm:$0xff]
      %v317 = vld [vmem:[%s1 + $0x18] sm:$0xff]
      %v318 = vld [vmem:[%s2] sm:$0x1]
      %v320 = vperm.slane %v318, 0
      %vm322 = vcmask 261120
      %v324 = vsel %vm322, %v282, 0
      %v327 = vsel %vm322, %v283, 0
      %v330 = vsel %vm322, %v284, 0
      %v333 = vsel %vm322, %v285, 0
      %v336 = vsel %vm322, %v286, 0
      %v339 = vsel %vm322, %v287, 0
      %v342 = vsel %vm322, %v288, 0
      %v345 = vsel %vm322, %v289, 0
      %v348 = vsel %vm322, %v290, 0
      %v351 = vsel %vm322, %v291, 0
      %v354 = vsel %vm322, %v292, 0
      %v357 = vsel %vm322, %v293, 0
      %v360 = vsel %vm322, %v294, 0
      %v363 = vsel %vm322, %v295, 0
      %v366 = vsel %vm322, %v296, 0
      %v369 = vsel %vm322, %v297, 0
      %v372 = vsel %vm322, %v298, 0
      %v375 = vsel %vm322, %v299, 0
      %v378 = vsel %vm322, %v300, 0
      %v381 = vsel %vm322, %v301, 0
      %v384 = vsel %vm322, %v302, 0
      %v387 = vsel %vm322, %v303, 0
      %v390 = vsel %vm322, %v304, 0
      %v393 = vsel %vm322, %v305, 0
      %v396 = vsel %vm322, %v306, 0
      %v399 = vsel %vm322, %v307, 0
      %v402 = vsel %vm322, %v308, 0
      %v405 = vsel %vm322, %v309, 0
      %v408 = vsel %vm322, %v310, 0
      %v411 = vsel %vm322, %v311, 0
      %v414 = vsel %vm322, %v312, 0
      %v417 = vsel %vm322, %v313, 0
      %419 = vmatpush.msra.mxu0 0.0
      %420 = vmatpush.msra.mxu0 0.0
      %421 = vmatpush.msra.mxu0 0.0
      %422 = vmatpush.msra.mxu0 0.0
      %423 = vmatpush.msra.mxu0 0.0
      %424 = vmatpush.msra.mxu0 0.0
      %425 = vmatpush.msra.mxu0 0.0
      %426 = vmatpush.msra.mxu0 0.0
      %427 = vmatpush.msra.mxu0 0.0
      %428 = vmatpush.msra.mxu0 0.0
      %429 = vmatpush.msra.mxu0 0.0
      %430 = vmatpush.msra.mxu0 0.0
      %431 = vmatpush.msra.mxu0 %v317
      %432 = vmatpush.msra.mxu0 %v316
      %433 = vmatpush.msra.mxu0 %v315
      %434 = vmatpush.msra.mxu0 %v314
      %435 = vmatmul.f32.gmra.mxu0 %v324
      %v436 = vpop.f32.mrf.mxu0
      %v437 = vadd.f32 %v320, %v436
      %438 = vmatmul.f32.gmra.mxu0 %v327
      %v439 = vpop.f32.mrf.mxu0
      %v440 = vadd.f32 %v320, %v439
      %441 = vmatmul.f32.gmra.mxu0 %v330
      %v442 = vpop.f32.mrf.mxu0
      %v443 = vadd.f32 %v320, %v442
      %444 = vmatmul.f32.gmra.mxu0 %v333
      %v445 = vpop.f32.mrf.mxu0
      %v446 = vadd.f32 %v320, %v445
      %447 = vmatmul.f32.gmra.mxu0 %v336
      %v448 = vpop.f32.mrf.mxu0
      %v449 = vadd.f32 %v320, %v448
      %450 = vmatmul.f32.gmra.mxu0 %v339
      %v451 = vpop.f32.mrf.mxu0
      %v452 = vadd.f32 %v320, %v451
      %453 = vmatmul.f32.gmra.mxu0 %v342
      %v454 = vpop.f32.mrf.mxu0
      %v455 = vadd.f32 %v320, %v454
      %456 = vmatmul.f32.gmra.mxu0 %v345
      %v457 = vpop.f32.mrf.mxu0
      %v458 = vadd.f32 %v320, %v457
      %459 = vmatmul.f32.gmra.mxu0 %v348
      %v460 = vpop.f32.mrf.mxu0
      %v461 = vadd.f32 %v320, %v460
      %462 = vmatmul.f32.gmra.mxu0 %v351
      %v463 = vpop.f32.mrf.mxu0
      %v464 = vadd.f32 %v320, %v463
      %465 = vmatmul.f32.gmra.mxu0 %v354
      %v466 = vpop.f32.mrf.mxu0
      %v467 = vadd.f32 %v320, %v466
      %468 = vmatmul.f32.gmra.mxu0 %v357
      %v469 = vpop.f32.mrf.mxu0
      %v470 = vadd.f32 %v320, %v469
      %471 = vmatmul.f32.gmra.mxu0 %v360
      %v472 = vpop.f32.mrf.mxu0
      %v473 = vadd.f32 %v320, %v472
      %474 = vmatmul.f32.gmra.mxu0 %v363
      %v475 = vpop.f32.mrf.mxu0
      %v476 = vadd.f32 %v320, %v475
      %477 = vmatmul.f32.gmra.mxu0 %v366
      %v478 = vpop.f32.mrf.mxu0
      %v479 = vadd.f32 %v320, %v478
      %480 = vmatmul.f32.gmra.mxu0 %v369
      %v481 = vpop.f32.mrf.mxu0
      %v482 = vadd.f32 %v320, %v481
      %483 = vmatmul.f32.gmra.mxu0 %v372
      %v484 = vpop.f32.mrf.mxu0
      %v485 = vadd.f32 %v320, %v484
      %486 = vmatmul.f32.gmra.mxu0 %v375
      %v487 = vpop.f32.mrf.mxu0
      %v488 = vadd.f32 %v320, %v487
      %489 = vmatmul.f32.gmra.mxu0 %v378
      %v490 = vpop.f32.mrf.mxu0
      %v491 = vadd.f32 %v320, %v490
      %492 = vmatmul.f32.gmra.mxu0 %v381
      %v493 = vpop.f32.mrf.mxu0
      %v494 = vadd.f32 %v320, %v493
      %495 = vmatmul.f32.gmra.mxu0 %v384
      %v496 = vpop.f32.mrf.mxu0
      %v497 = vadd.f32 %v320, %v496
      %498 = vmatmul.f32.gmra.mxu0 %v387
      %v499 = vpop.f32.mrf.mxu0
      %v500 = vadd.f32 %v320, %v499
      %501 = vmatmul.f32.gmra.mxu0 %v390
      %v502 = vpop.f32.mrf.mxu0
      %v503 = vadd.f32 %v320, %v502
      %504 = vmatmul.f32.gmra.mxu0 %v393
      %v505 = vpop.f32.mrf.mxu0
      %v506 = vadd.f32 %v320, %v505
      %507 = vmatmul.f32.gmra.mxu0 %v396
      %v508 = vpop.f32.mrf.mxu0
      %v509 = vadd.f32 %v320, %v508
      %510 = vmatmul.f32.gmra.mxu0 %v399
      %v511 = vpop.f32.mrf.mxu0
      %v512 = vadd.f32 %v320, %v511
      %513 = vmatmul.f32.gmra.mxu0 %v402
      %v514 = vpop.f32.mrf.mxu0
      %v515 = vadd.f32 %v320, %v514
      %516 = vmatmul.f32.gmra.mxu0 %v405
      %v517 = vpop.f32.mrf.mxu0
      %v518 = vadd.f32 %v320, %v517
      %519 = vmatmul.f32.gmra.mxu0 %v408
      %v520 = vpop.f32.mrf.mxu0
      %v521 = vadd.f32 %v320, %v520
      %522 = vmatmul.f32.gmra.mxu0 %v411
      %v523 = vpop.f32.mrf.mxu0
      %v524 = vadd.f32 %v320, %v523
      %525 = vmatmul.f32.gmra.mxu0 %v414
      %v526 = vpop.f32.mrf.mxu0
      %v527 = vadd.f32 %v320, %v526
      %528 = vmatmul.f32.gmra.mxu0 %v417
      %v529 = vpop.f32.mrf.mxu0
      %v530 = vadd.f32 %v320, %v529
      %531 = vdwg.mxu0
      %v532 = vmax.f32 %v437, 0.0
      %v533 = vmax.f32 %v440, 0.0
      %v534 = vmax.f32 %v443, 0.0
      %v535 = vmax.f32 %v446, 0.0
      %v536 = vmax.f32 %v449, 0.0
      %v537 = vmax.f32 %v452, 0.0
      %v538 = vmax.f32 %v455, 0.0
      %v539 = vmax.f32 %v458, 0.0
      %v540 = vmax.f32 %v461, 0.0
      %v541 = vmax.f32 %v464, 0.0
      %v542 = vmax.f32 %v467, 0.0
      %v543 = vmax.f32 %v470, 0.0
      %v544 = vmax.f32 %v473, 0.0
      %v545 = vmax.f32 %v476, 0.0
      %v546 = vmax.f32 %v479, 0.0
      %v547 = vmax.f32 %v482, 0.0
      %v548 = vmax.f32 %v485, 0.0
      %v549 = vmax.f32 %v488, 0.0
      %v550 = vmax.f32 %v491, 0.0
      %v551 = vmax.f32 %v494, 0.0
      %v552 = vmax.f32 %v497, 0.0
      %v553 = vmax.f32 %v500, 0.0
      %v554 = vmax.f32 %v503, 0.0
      %v555 = vmax.f32 %v506, 0.0
      %v556 = vmax.f32 %v509, 0.0
      %v557 = vmax.f32 %v512, 0.0
      %v558 = vmax.f32 %v515, 0.0
      %v559 = vmax.f32 %v518, 0.0
      %v560 = vmax.f32 %v521, 0.0
      %v561 = vmax.f32 %v524, 0.0
      %v562 = vmax.f32 %v527, 0.0
      %v563 = vmax.f32 %v530, 0.0
      %v564 = vld [vmem:[%s3] sm:$0xff]
      %v565 = vld [vmem:[%s3 + $0x8] sm:$0xff]
      %v566 = vld [vmem:[%s3 + $0x10] sm:$0xff]
      %v567 = vld [vmem:[%s3 + $0x18] sm:$0xff]
      %v568 = vld [vmem:[%s3 + $0x20] sm:$0xff]
      %v569 = vld [vmem:[%s3 + $0x28] sm:$0xff]
      %v570 = vld [vmem:[%s3 + $0x30] sm:$0xff]
      %v571 = vld [vmem:[%s3 + $0x38] sm:$0xff]
      %v572 = vld [vmem:[%s4] sm:$0x1]
      %v574 = vperm.slane %v572, 0
      %vm576 = vcmask 523264
      %v578 = vsel %vm576, %v532, 0
      %v581 = vsel %vm576, %v533, 0
      %v584 = vsel %vm576, %v534, 0
      %v587 = vsel %vm576, %v535, 0
      %v590 = vsel %vm576, %v536, 0
      %v593 = vsel %vm576, %v537, 0
      %v596 = vsel %vm576, %v538, 0
      %v599 = vsel %vm576, %v539, 0
      %v602 = vsel %vm576, %v540, 0
      %v605 = vsel %vm576, %v541, 0
      %v608 = vsel %vm576, %v542, 0
      %v611 = vsel %vm576, %v543, 0
      %v614 = vsel %vm576, %v544, 0
      %v617 = vsel %vm576, %v545, 0
      %v620 = vsel %vm576, %v546, 0
      %v623 = vsel %vm576, %v547, 0
      %v626 = vsel %vm576, %v548, 0
      %v629 = vsel %vm576, %v549, 0
      %v632 = vsel %vm576, %v550, 0
      %v635 = vsel %vm576, %v551, 0
      %v638 = vsel %vm576, %v552, 0
      %v641 = vsel %vm576, %v553, 0
      %v644 = vsel %vm576, %v554, 0
      %v647 = vsel %vm576, %v555, 0
      %v650 = vsel %vm576, %v556, 0
      %v653 = vsel %vm576, %v557, 0
      %v656 = vsel %vm576, %v558, 0
      %v659 = vsel %vm576, %v559, 0
      %v662 = vsel %vm576, %v560, 0
      %v665 = vsel %vm576, %v561, 0
      %v668 = vsel %vm576, %v562, 0
      %v671 = vsel %vm576, %v563, 0
      %673 = vmatpush.msra.mxu0 0.0
      %674 = vmatpush.msra.mxu0 0.0
      %675 = vmatpush.msra.mxu0 0.0
      %676 = vmatpush.msra.mxu0 0.0
      %677 = vmatpush.msra.mxu0 0.0
      %678 = vmatpush.msra.mxu0 0.0
      %679 = vmatpush.msra.mxu0 0.0
      %680 = vmatpush.msra.mxu0 0.0
      %681 = vmatpush.msra.mxu0 %v571
      %682 = vmatpush.msra.mxu0 %v570
      %683 = vmatpush.msra.mxu0 %v569
      %684 = vmatpush.msra.mxu0 %v568
      %685 = vmatpush.msra.mxu0 %v567
      %686 = vmatpush.msra.mxu0 %v566
      %687 = vmatpush.msra.mxu0 %v565
      %688 = vmatpush.msra.mxu0 %v564
      %689 = vmatmul.f32.gmra.mxu0 %v578
      %v690 = vpop.f32.mrf.mxu0
      %v691 = vadd.f32 %v574, %v690
      %692 = vmatmul.f32.gmra.mxu0 %v581
      %v693 = vpop.f32.mrf.mxu0
      %v694 = vadd.f32 %v574, %v693
      %695 = vmatmul.f32.gmra.mxu0 %v584
      %v696 = vpop.f32.mrf.mxu0
      %v697 = vadd.f32 %v574, %v696
      %698 = vmatmul.f32.gmra.mxu0 %v587
      %v699 = vpop.f32.mrf.mxu0
      %v700 = vadd.f32 %v574, %v699
      %701 = vmatmul.f32.gmra.mxu0 %v590
      %v702 = vpop.f32.mrf.mxu0
      %v703 = vadd.f32 %v574, %v702
      %704 = vmatmul.f32.gmra.mxu0 %v593
      %v705 = vpop.f32.mrf.mxu0
      %v706 = vadd.f32 %v574, %v705
      %707 = vmatmul.f32.gmra.mxu0 %v596
      %v708 = vpop.f32.mrf.mxu0
      %v709 = vadd.f32 %v574, %v708
      %710 = vmatmul.f32.gmra.mxu0 %v599
      %v711 = vpop.f32.mrf.mxu0
      %v712 = vadd.f32 %v574, %v711
      %713 = vmatmul.f32.gmra.mxu0 %v602
      %v714 = vpop.f32.mrf.mxu0
      %v715 = vadd.f32 %v574, %v714
      %716 = vmatmul.f32.gmra.mxu0 %v605
      %v717 = vpop.f32.mrf.mxu0
      %v718 = vadd.f32 %v574, %v717
      %719 = vmatmul.f32.gmra.mxu0 %v608
      %v720 = vpop.f32.mrf.mxu0
      %v721 = vadd.f32 %v574, %v720
      %722 = vmatmul.f32.gmra.mxu0 %v611
      %v723 = vpop.f32.mrf.mxu0
      %v724 = vadd.f32 %v574, %v723
      %725 = vmatmul.f32.gmra.mxu0 %v614
      %v726 = vpop.f32.mrf.mxu0
      %v727 = vadd.f32 %v574, %v726
      %728 = vmatmul.f32.gmra.mxu0 %v617
      %v729 = vpop.f32.mrf.mxu0
      %v730 = vadd.f32 %v574, %v729
      %731 = vmatmul.f32.gmra.mxu0 %v620
      %v732 = vpop.f32.mrf.mxu0
      %v733 = vadd.f32 %v574, %v732
      %734 = vmatmul.f32.gmra.mxu0 %v623
      %v735 = vpop.f32.mrf.mxu0
      %v736 = vadd.f32 %v574, %v735
      %737 = vmatmul.f32.gmra.mxu0 %v626
      %v738 = vpop.f32.mrf.mxu0
      %v739 = vadd.f32 %v574, %v738
      %740 = vmatmul.f32.gmra.mxu0 %v629
      %v741 = vpop.f32.mrf.mxu0
      %v742 = vadd.f32 %v574, %v741
      %743 = vmatmul.f32.gmra.mxu0 %v632
      %v744 = vpop.f32.mrf.mxu0
      %v745 = vadd.f32 %v574, %v744
      %746 = vmatmul.f32.gmra.mxu0 %v635
      %v747 = vpop.f32.mrf.mxu0
      %v748 = vadd.f32 %v574, %v747
      %749 = vmatmul.f32.gmra.mxu0 %v638
      %v750 = vpop.f32.mrf.mxu0
      %v751 = vadd.f32 %v574, %v750
      %752 = vmatmul.f32.gmra.mxu0 %v641
      %v753 = vpop.f32.mrf.mxu0
      %v754 = vadd.f32 %v574, %v753
      %755 = vmatmul.f32.gmra.mxu0 %v644
      %v756 = vpop.f32.mrf.mxu0
      %v757 = vadd.f32 %v574, %v756
      %758 = vmatmul.f32.gmra.mxu0 %v647
      %v759 = vpop.f32.mrf.mxu0
      %v760 = vadd.f32 %v574, %v759
      %761 = vmatmul.f32.gmra.mxu0 %v650
      %v762 = vpop.f32.mrf.mxu0
      %v763 = vadd.f32 %v574, %v762
      %764 = vmatmul.f32.gmra.mxu0 %v653
      %v765 = vpop.f32.mrf.mxu0
      %v766 = vadd.f32 %v574, %v765
      %767 = vmatmul.f32.gmra.mxu0 %v656
      %v768 = vpop.f32.mrf.mxu0
      %v769 = vadd.f32 %v574, %v768
      %770 = vmatmul.f32.gmra.mxu0 %v659
      %v771 = vpop.f32.mrf.mxu0
      %v772 = vadd.f32 %v574, %v771
      %773 = vmatmul.f32.gmra.mxu0 %v662
      %v774 = vpop.f32.mrf.mxu0
      %v775 = vadd.f32 %v574, %v774
      %776 = vmatmul.f32.gmra.mxu0 %v665
      %v777 = vpop.f32.mrf.mxu0
      %v778 = vadd.f32 %v574, %v777
      %779 = vmatmul.f32.gmra.mxu0 %v668
      %v780 = vpop.f32.mrf.mxu0
      %v781 = vadd.f32 %v574, %v780
      %782 = vmatmul.f32.gmra.mxu0 %v671
      %v783 = vpop.f32.mrf.mxu0
      %v784 = vadd.f32 %v574, %v783
      %785 = vdwg.mxu0
      %v786 = vmax.f32 %v691, 0.0
      %v787 = vmax.f32 %v694, 0.0
      %v788 = vmax.f32 %v697, 0.0
      %v789 = vmax.f32 %v700, 0.0
      %v790 = vmax.f32 %v703, 0.0
      %v791 = vmax.f32 %v706, 0.0
      %v792 = vmax.f32 %v709, 0.0
      %v793 = vmax.f32 %v712, 0.0
      %v794 = vmax.f32 %v715, 0.0
      %v795 = vmax.f32 %v718, 0.0
      %v796 = vmax.f32 %v721, 0.0
      %v797 = vmax.f32 %v724, 0.0
      %v798 = vmax.f32 %v727, 0.0
      %v799 = vmax.f32 %v730, 0.0
      %v800 = vmax.f32 %v733, 0.0
      %v801 = vmax.f32 %v736, 0.0
      %v802 = vmax.f32 %v739, 0.0
      %v803 = vmax.f32 %v742, 0.0
      %v804 = vmax.f32 %v745, 0.0
      %v805 = vmax.f32 %v748, 0.0
      %v806 = vmax.f32 %v751, 0.0
      %v807 = vmax.f32 %v754, 0.0
      %v808 = vmax.f32 %v757, 0.0
      %v809 = vmax.f32 %v760, 0.0
      %v810 = vmax.f32 %v763, 0.0
      %v811 = vmax.f32 %v766, 0.0
      %v812 = vmax.f32 %v769, 0.0
      %v813 = vmax.f32 %v772, 0.0
      %v814 = vmax.f32 %v775, 0.0
      %v815 = vmax.f32 %v778, 0.0
      %v816 = vmax.f32 %v781, 0.0
      %v817 = vmax.f32 %v784, 0.0
      %v818 = vld [vmem:[%s5] sm:$0xff]
      %v819 = vld [vmem:[%s5 + $0x8] sm:$0xff]
      %v820 = vld [vmem:[%s5 + $0x10] sm:$0xff]
      %v821 = vld [vmem:[%s5 + $0x18] sm:$0xff]
      %v822 = vld [vmem:[%s6] sm:$0x1]
      %v824 = vperm.slane %v822, 0
      %v827 = vsel %vm322, %v786, 0
      %v830 = vsel %vm322, %v787, 0
      %v833 = vsel %vm322, %v788, 0
      %v836 = vsel %vm322, %v789, 0
      %v839 = vsel %vm322, %v790, 0
      %v842 = vsel %vm322, %v791, 0
      %v845 = vsel %vm322, %v792, 0
      %v848 = vsel %vm322, %v793, 0
      %v851 = vsel %vm322, %v794, 0
      %v854 = vsel %vm322, %v795, 0
      %v857 = vsel %vm322, %v796, 0
      %v860 = vsel %vm322, %v797, 0
      %v863 = vsel %vm322, %v798, 0
      %v866 = vsel %vm322, %v799, 0
      %v869 = vsel %vm322, %v800, 0
      %v872 = vsel %vm322, %v801, 0
      %v875 = vsel %vm322, %v802, 0
      %v878 = vsel %vm322, %v803, 0
      %v881 = vsel %vm322, %v804, 0
      %v884 = vsel %vm322, %v805, 0
      %v887 = vsel %vm322, %v806, 0
      %v890 = vsel %vm322, %v807, 0
      %v893 = vsel %vm322, %v808, 0
      %v896 = vsel %vm322, %v809, 0
      %v899 = vsel %vm322, %v810, 0
      %v902 = vsel %vm322, %v811, 0
      %v905 = vsel %vm322, %v812, 0
      %v908 = vsel %vm322, %v813, 0
      %v911 = vsel %vm322, %v814, 0
      %v914 = vsel %vm322, %v815, 0
      %v917 = vsel %vm322, %v816, 0
      %v920 = vsel %vm322, %v817, 0
      %922 = vmatpush.msra.mxu0 0.0
      %923 = vmatpush.msra.mxu0 0.0
      %924 = vmatpush.msra.mxu0 0.0
      %925 = vmatpush.msra.mxu0 0.0
      %926 = vmatpush.msra.mxu0 0.0
      %927 = vmatpush.msra.mxu0 0.0
      %928 = vmatpush.msra.mxu0 0.0
      %929 = vmatpush.msra.mxu0 0.0
      %930 = vmatpush.msra.mxu0 0.0
      %931 = vmatpush.msra.mxu0 0.0
      %932 = vmatpush.msra.mxu0 0.0
      %933 = vmatpush.msra.mxu0 0.0
      %934 = vmatpush.msra.mxu0 %v821
      %935 = vmatpush.msra.mxu0 %v820
      %936 = vmatpush.msra.mxu0 %v819
      %937 = vmatpush.msra.mxu0 %v818
      %938 = vmatmul.f32.gmra.mxu0 %v827
      %v939 = vpop.f32.mrf.mxu0
      %v940 = vadd.f32 %v824, %v939
      %941 = vmatmul.f32.gmra.mxu0 %v830
      %v942 = vpop.f32.mrf.mxu0
      %v943 = vadd.f32 %v824, %v942
      %944 = vmatmul.f32.gmra.mxu0 %v833
      %v945 = vpop.f32.mrf.mxu0
      %v946 = vadd.f32 %v824, %v945
      %947 = vmatmul.f32.gmra.mxu0 %v836
      %v948 = vpop.f32.mrf.mxu0
      %v949 = vadd.f32 %v824, %v948
      %950 = vmatmul.f32.gmra.mxu0 %v839
      %v951 = vpop.f32.mrf.mxu0
      %v952 = vadd.f32 %v824, %v951
      %953 = vmatmul.f32.gmra.mxu0 %v842
      %v954 = vpop.f32.mrf.mxu0
      %v955 = vadd.f32 %v824, %v954
      %956 = vmatmul.f32.gmra.mxu0 %v845
      %v957 = vpop.f32.mrf.mxu0
      %v958 = vadd.f32 %v824, %v957
      %959 = vmatmul.f32.gmra.mxu0 %v848
      %v960 = vpop.f32.mrf.mxu0
      %v961 = vadd.f32 %v824, %v960
      %962 = vmatmul.f32.gmra.mxu0 %v851
      %v963 = vpop.f32.mrf.mxu0
      %v964 = vadd.f32 %v824, %v963
      %965 = vmatmul.f32.gmra.mxu0 %v854
      %v966 = vpop.f32.mrf.mxu0
      %v967 = vadd.f32 %v824, %v966
      %968 = vmatmul.f32.gmra.mxu0 %v857
      %v969 = vpop.f32.mrf.mxu0
      %v970 = vadd.f32 %v824, %v969
      %971 = vmatmul.f32.gmra.mxu0 %v860
      %v972 = vpop.f32.mrf.mxu0
      %v973 = vadd.f32 %v824, %v972
      %974 = vmatmul.f32.gmra.mxu0 %v863
      %v975 = vpop.f32.mrf.mxu0
      %v976 = vadd.f32 %v824, %v975
      %977 = vmatmul.f32.gmra.mxu0 %v866
      %v978 = vpop.f32.mrf.mxu0
      %v979 = vadd.f32 %v824, %v978
      %980 = vmatmul.f32.gmra.mxu0 %v869
      %v981 = vpop.f32.mrf.mxu0
      %v982 = vadd.f32 %v824, %v981
      %983 = vmatmul.f32.gmra.mxu0 %v872
      %v984 = vpop.f32.mrf.mxu0
      %v985 = vadd.f32 %v824, %v984
      %986 = vmatmul.f32.gmra.mxu0 %v875
      %v987 = vpop.f32.mrf.mxu0
      %v988 = vadd.f32 %v824, %v987
      %989 = vmatmul.f32.gmra.mxu0 %v878
      %v990 = vpop.f32.mrf.mxu0
      %v991 = vadd.f32 %v824, %v990
      %992 = vmatmul.f32.gmra.mxu0 %v881
      %v993 = vpop.f32.mrf.mxu0
      %v994 = vadd.f32 %v824, %v993
      %995 = vmatmul.f32.gmra.mxu0 %v884
      %v996 = vpop.f32.mrf.mxu0
      %v997 = vadd.f32 %v824, %v996
      %998 = vmatmul.f32.gmra.mxu0 %v887
      %v999 = vpop.f32.mrf.mxu0
      %v1000 = vadd.f32 %v824, %v999
      %1001 = vmatmul.f32.gmra.mxu0 %v890
      %v1002 = vpop.f32.mrf.mxu0
      %v1003 = vadd.f32 %v824, %v1002
      %1004 = vmatmul.f32.gmra.mxu0 %v893
      %v1005 = vpop.f32.mrf.mxu0
      %v1006 = vadd.f32 %v824, %v1005
      %1007 = vmatmul.f32.gmra.mxu0 %v896
      %v1008 = vpop.f32.mrf.mxu0
      %v1009 = vadd.f32 %v824, %v1008
      %1010 = vmatmul.f32.gmra.mxu0 %v899
      %v1011 = vpop.f32.mrf.mxu0
      %v1012 = vadd.f32 %v824, %v1011
      %1013 = vmatmul.f32.gmra.mxu0 %v902
      %v1014 = vpop.f32.mrf.mxu0
      %v1015 = vadd.f32 %v824, %v1014
      %1016 = vmatmul.f32.gmra.mxu0 %v905
      %v1017 = vpop.f32.mrf.mxu0
      %v1018 = vadd.f32 %v824, %v1017
      %1019 = vmatmul.f32.gmra.mxu0 %v908
      %v1020 = vpop.f32.mrf.mxu0
      %v1021 = vadd.f32 %v824, %v1020
      %1022 = vmatmul.f32.gmra.mxu0 %v911
      %v1023 = vpop.f32.mrf.mxu0
      %v1024 = vadd.f32 %v824, %v1023
      %1025 = vmatmul.f32.gmra.mxu0 %v914
      %v1026 = vpop.f32.mrf.mxu0
      %v1027 = vadd.f32 %v824, %v1026
      %1028 = vmatmul.f32.gmra.mxu0 %v917
      %v1029 = vpop.f32.mrf.mxu0
      %v1030 = vadd.f32 %v824, %v1029
      %1031 = vmatmul.f32.gmra.mxu0 %v920
      %v1032 = vpop.f32.mrf.mxu0
      %v1033 = vadd.f32 %v824, %v1032
      %1034 = vdwg.mxu0
      %vm1035 = vcmask 64512
      %1036 = vst.msk [vmem:[%s280] sm:$0xff] %vm1035, %v940
      %1037 = vst.msk [vmem:[%s280 + $0x8] sm:$0xff] %vm1035, %v943
      %1038 = vst.msk [vmem:[%s280 + $0x10] sm:$0xff] %vm1035, %v946
      %1039 = vst.msk [vmem:[%s280 + $0x18] sm:$0xff] %vm1035, %v949
      %1040 = vst.msk [vmem:[%s280 + $0x20] sm:$0xff] %vm1035, %v952
      %1041 = vst.msk [vmem:[%s280 + $0x28] sm:$0xff] %vm1035, %v955
      %1042 = vst.msk [vmem:[%s280 + $0x30] sm:$0xff] %vm1035, %v958
      %1043 = vst.msk [vmem:[%s280 + $0x38] sm:$0xff] %vm1035, %v961
      %1044 = vst.msk [vmem:[%s280 + $0x40] sm:$0xff] %vm1035, %v964
      %1045 = vst.msk [vmem:[%s280 + $0x48] sm:$0xff] %vm1035, %v967
      %1046 = vst.msk [vmem:[%s280 + $0x50] sm:$0xff] %vm1035, %v970
      %1047 = vst.msk [vmem:[%s280 + $0x58] sm:$0xff] %vm1035, %v973
      %1048 = vst.msk [vmem:[%s280 + $0x60] sm:$0xff] %vm1035, %v976
      %1049 = vst.msk [vmem:[%s280 + $0x68] sm:$0xff] %vm1035, %v979
      %1050 = vst.msk [vmem:[%s280 + $0x70] sm:$0xff] %vm1035, %v982
      %1051 = vst.msk [vmem:[%s280 + $0x78] sm:$0xff] %vm1035, %v985
      %1052 = vst.msk [vmem:[%s280 + $0x80] sm:$0xff] %vm1035, %v988
      %1053 = vst.msk [vmem:[%s280 + $0x88] sm:$0xff] %vm1035, %v991
      %1054 = vst.msk [vmem:[%s280 + $0x90] sm:$0xff] %vm1035, %v994
      %1055 = vst.msk [vmem:[%s280 + $0x98] sm:$0xff] %vm1035, %v997
      %1056 = vst.msk [vmem:[%s280 + $0xa0] sm:$0xff] %vm1035, %v1000
      %1057 = vst.msk [vmem:[%s280 + $0xa8] sm:$0xff] %vm1035, %v1003
      %1058 = vst.msk [vmem:[%s280 + $0xb0] sm:$0xff] %vm1035, %v1006
      %1059 = vst.msk [vmem:[%s280 + $0xb8] sm:$0xff] %vm1035, %v1009
      %1060 = vst.msk [vmem:[%s280 + $0xc0] sm:$0xff] %vm1035, %v1012
      %1061 = vst.msk [vmem:[%s280 + $0xc8] sm:$0xff] %vm1035, %v1015
      %1062 = vst.msk [vmem:[%s280 + $0xd0] sm:$0xff] %vm1035, %v1018
      %1063 = vst.msk [vmem:[%s280 + $0xd8] sm:$0xff] %vm1035, %v1021
      %1064 = vst.msk [vmem:[%s280 + $0xe0] sm:$0xff] %vm1035, %v1024
      %1065 = vst.msk [vmem:[%s280 + $0xe8] sm:$0xff] %vm1035, %v1027
      %1066 = vst.msk [vmem:[%s280 + $0xf0] sm:$0xff] %vm1035, %v1030
      %1067 = vst.msk [vmem:[%s280 + $0xf8] sm:$0xff] %vm1035, %v1033
      %s1068 = smul.u32 32, %s18
      %p1069 = scmp.lt.s32.totalorder %s1068, 63
      %s1070 = scalar_select %p1069, %s1068, 63
      %s1071 = smul.addr %s1070, 8
      %s1072 = scalar_lea.vmem %s7, %s1071
      // Predicated region
      $region49: #{tpu_custom_call.1} parent=47 // pred_check
        %p1073 = pneg %p188
      $region50: #{tpu_custom_call.1} parent=47 // pred_check_branch
        %1075 = sbr.rel (%p1073) target = $region52
      $region51: #{tpu_custom_call.1} parent=47 // pred_region
        %s1076 = smul.u32 32, %s18
      $region52: #{tpu_custom_call.1} parent=47 // pred_fallthru
        _
    $region48: #{tpu_custom_call.1} parent=5 // pred_fallthru
      _
    %p1077 = scmp.le.s32.totalorder 2, %s13
    // Predicated region
    $region53: #{tpu_custom_call.1} parent=5 // pred_check
      %p1078 = pneg %p1077
    $region54: #{tpu_custom_call.1} parent=5 // pred_check_branch
      %1080 = sbr.rel (%p1078) target = $region56
    $region55: #{tpu_custom_call.1} parent=5 // pred_region
      %s1081 = ssub.s32 %s13, 2
      // Predicated region
      $region57: #{tpu_custom_call.1} parent=55 // pred_check
        %p1082 = pneg %p194
      $region58: #{tpu_custom_call.1} parent=55 // pred_check_branch
        %1084 = sbr.rel (%p1082) target = $region60
      $region59: #{tpu_custom_call.1} parent=55 // pred_region
        %s1085 = smul.u32 32, %s19
        %p1086 = scmp.lt.s32.totalorder %s1085, 63
        %s1087 = scalar_select %p1086, %s1085, 63
        %s1088 = smul.addr %s1087, 8
        %s1089 = scalar_lea.vmem %s7, %s1088
      $region60: #{tpu_custom_call.1} parent=55 // pred_fallthru
        _
    $region56: #{tpu_custom_call.1} parent=5 // pred_fallthru
      _
  $region6: #{tpu_custom_call.1} parent=0 // loop_footer
    %s17 = sadd.s32 1, %s13
  $region7: #{tpu_custom_call.1} parent=0 // loop_footer_branch
    %12 = sbr.rel target = $region3
  $region8: #{tpu_custom_call.1} parent=0 // loop_exit
    _

</llo_original>
